<compile_context>
chip_gen: v7x
topology: tpu7x:2x2x1
jax: 0.10.0
libtpu: 0.0.40
codegen_flags: <defaults>
</compile_context>

<pallas_src>
import functools

import jax
import jax.numpy as jnp
from jax import lax
from jax.experimental import pallas as pl
from jax.experimental.pallas import tpu as pltpu


def _residual_kernel(*refs, p, eps, column_tiled):
    if column_tiled:
        (seed_ref, x_ref, xcol_ref, w_ref, b_ref, ln_ref, out_ref, normed_ref) = refs
    else:
        (seed_ref, x_ref, w_ref, b_ref, ln_ref, out_ref) = refs
        xcol_ref = None
        normed_ref = None

    i = pl.program_id(0)
    j = pl.program_id(1)
    tm, d = x_ref.shape
    keep_scale = 1.0 / (1.0 - p) if p > 0.0 else 1.0

    def layer_norm_rows():
        x = x_ref[...].astype(jnp.float32)
        # One-pass stats: the two cross-lane reductions have no serial dependency.
        sum_x = jnp.sum(x, axis=-1, keepdims=True)
        sum_x2 = jnp.sum(x * x, axis=-1, keepdims=True)
        mean = sum_x * (1.0 / d)
        var = (sum_x2 - sum_x * mean) * (1.0 / max(d - 1, 1))   # unbiased (torch.std)
        inv = pl.reciprocal(jnp.sqrt(var) + eps, approx=False)  # (tm,1): exact, negligible
        # Fold alpha AND the dropout survivor scale 1/(1-p) into the row scale/bias.
        scale = (ln_ref[0] * keep_scale) * inv                  # (tm, 1)
        rbias = ln_ref[1] * keep_scale - scale * mean           # (tm, 1)
        return (x * scale + rbias).astype(w_ref.dtype)          # MXU-native dtype

    if column_tiled:
        # LayerNorm once per row tile; reuse the cached rows for every column block.
        @pl.when(j == 0)
        def _():
            normed_ref[...] = layer_norm_rows()
        normed = normed_ref[...]
        x_res = xcol_ref[...]
    else:
        normed = layer_norm_rows()
        x_res = x_ref[...]

    # --- sublayer: Linear(D, D), output-column block j, on the MXU (f32 accumulate) ---
    y = jnp.dot(normed, w_ref[...], preferred_element_type=jnp.float32)
    y = y + b_ref[...]            # linear bias pre-scaled by 1/(1-p) in the wrapper (f32)

    # --- dropout: rank-1 counter hash + one full-width mixing round (scale pre-folded) ---
    if p > 0.0:
        rows, cols = y.shape
        row_ids = (lax.broadcasted_iota(jnp.uint32, (rows, 1), 0)
                   + (i * rows).astype(jnp.uint32))
        hr = (row_ids ^ seed_ref[0].astype(jnp.uint32)) * jnp.uint32(0x9E3779B9)
        hr = hr ^ (hr >> 16)
        hr = hr * jnp.uint32(0x85EBCA6B)                        # (tm,1): cheap, well mixed
        col_ids = (lax.broadcasted_iota(jnp.uint32, (1, cols), 1)
                   + (j * cols).astype(jnp.uint32))
        hc = col_ids * jnp.uint32(0xC2B2AE35)                   # (1,tn): cheap
        h = hr + hc                                             # full-width broadcast add
        h = h ^ (h >> 15)
        h = h * jnp.uint32(0x27D4EB2F)                          # one full-width mix round
        thresh = min(int(round(p * (1 << 24))), (1 << 24) - 1)
        keep = (h >> 8).astype(jnp.int32) >= jnp.int32(thresh)
        y = jnp.where(keep, y, 0.0)                             # survivor scale already folded

    # --- residual add: re-read the bf16 x block (no f32 copy live across the matmul) ---
    out_ref[...] = (x_res.astype(jnp.float32) + y).astype(out_ref.dtype)


def _vmem_capacity_bytes():
    try:
        return int(pltpu.get_tpu_info().vmem_capacity_bytes)
    except Exception:
        return 64 << 20            # conservative fallback (v7x per-TC VMEM)


def _vmem_estimate(tm, tn, d, x_isz, w_isz, column_tiled):
    w_bufs = 2 if column_tiled else 1        # invariant (D,D) weight is single-buffered
    xcol = 2 * tm * tn * x_isz if column_tiled else 0
    scratch = tm * d * w_isz if column_tiled else 0
    return (2 * tm * d * x_isz               # double-buffered x row blocks
            + xcol                           # double-buffered residual x column blocks
            + 2 * tm * tn * x_isz            # double-buffered out blocks
            + w_bufs * d * tn * w_isz        # weight blocks
            + 2 * 4 * tn                     # f32 bias blocks
            + scratch                        # cached normed rows (weight dtype)
            + 6 * tm * tn * 4                # f32 matmul / dropout intermediates
            + 2 * tm * d * 4)                # f32 LN temporaries (j == 0) / regalloc slack


def _plan_tiles(nrows, d, x_isz, w_isz, budget):
    """Pick (tm, tn). Prefer the whole-weight path with a big row tile; fall back to
    a column-tiled weight when a resident (D, D) weight would crush the row tile."""
    ladder = (1024, 512, 256, 128, 64, 32, 16, 8)

    def rows_ok(tm):
        return tm == 8 or tm < 2 * nrows

    # 1) whole weight resident (single-buffered), healthy row tile.
    for tm in ladder:
        if not rows_ok(tm) or (tm > 512 and d > 1024):
            continue
        if tm >= 256 and _vmem_estimate(tm, d, d, x_isz, w_isz, False) <= budget:
            return tm, d
    # 2) column-tiled weight: (D, tn) blocks, keep tm at 256-512.
    for tn in (512, 256, 128):
        if tn >= d or d % tn:
            continue
        for tm in ladder:
            if not rows_ok(tm) or tm < 256 or tm > 512:
                continue
            if _vmem_estimate(tm, tn, d, x_isz, w_isz, True) <= budget:
                return tm, tn
    # 3) fallback: whatever whole-weight tile fits.
    for tm in ladder:
        if not rows_ok(tm):
            continue
        if _vmem_estimate(tm, d, d, x_isz, w_isz, False) <= budget:
            return tm, d
    return 8, d


def residual_connection(x, w, b_lin, ln_params, seed, *, p, eps=1e-6, tm=None, tn=None):
    """x: (B, S, D); w: (D, D); b_lin: (1, D) f32; ln_params: (2,) f32 [alpha, bias];
    seed: (1,) int32.  Returns x + dropout(LN(x) @ w + b_lin), shape (B, S, D)."""
    B, S, D = x.shape
    nrows = B * S
    x_isz = jnp.dtype(x.dtype).itemsize
    w_isz = jnp.dtype(w.dtype).itemsize

    cap = _vmem_capacity_bytes()
    budget = int(0.65 * cap)                           # generation-aware working-set budget
    if tm is None or tn is None:
        tm_a, tn_a = _plan_tiles(nrows, D, x_isz, w_isz, budget)
        tm = tm if tm is not None else tm_a
        tn = tn if tn is not None else tn_a
    assert D % tn == 0, "tn must divide d_model"
    n_col = D // tn
    n_row = pl.cdiv(nrows, tm)
    rows_p = n_row * tm

    x2 = x.reshape(nrows, D)
    if rows_p != nrows:                                # pad tail rows instead of asserting
        x2 = jnp.pad(x2, ((0, rows_p - nrows), (0, 0)))

    keep_scale = 1.0 / (1.0 - float(p)) if p > 0.0 else 1.0
    b_scaled = b_lin.astype(jnp.float32) * keep_scale  # fold dropout scale once, (1, D)

    column_tiled = n_col > 1
    est = _vmem_estimate(tm, tn, D, x_isz, w_isz, column_tiled)
    vmem_limit = int(min(max(1.25 * est, 32 << 20), 0.75 * cap))

    if column_tiled:
        in_specs = [
            pl.BlockSpec((tm, D), lambda i, j, s: (i, 0)),     # x full rows (LN, j==0 only)
            pl.BlockSpec((tm, tn), lambda i, j, s: (i, j)),    # x column slice (residual)
            pl.BlockSpec((D, tn), lambda i, j, s: (0, j)),     # weight column block
            pl.BlockSpec((1, tn), lambda i, j, s: (0, j)),     # bias column slice (f32)
            pl.BlockSpec(memory_space=pltpu.MemorySpace.SMEM),  # [alpha, bias]
        ]
        operands = (seed, x2, x2, w, b_scaled, ln_params)
        scratch = [pltpu.VMEM((tm, D), w.dtype)]               # cached normed rows
    else:
        in_specs = [
            pl.BlockSpec((tm, D), lambda i, j, s: (i, 0)),     # x rows
            pl.BlockSpec((D, D), lambda i, j, s: (0, 0),       # invariant weight
                         pipeline_mode=pl.Buffered(1)),
            pl.BlockSpec((1, D), lambda i, j, s: (0, 0),       # invariant bias (f32)
                         pipeline_mode=pl.Buffered(1)),
            pl.BlockSpec(memory_space=pltpu.MemorySpace.SMEM),  # [alpha, bias]
        ]
        operands = (seed, x2, w, b_scaled, ln_params)
        scratch = []

    kernel = functools.partial(_residual_kernel, p=float(p), eps=float(eps),
                               column_tiled=column_tiled)

    out = pl.pallas_call(
        kernel,
        out_shape=jax.ShapeDtypeStruct((rows_p, D), x.dtype),
        grid_spec=pltpu.PrefetchScalarGridSpec(
            num_scalar_prefetch=1,                             # seed -> SMEM
            grid=(n_row, n_col),
            in_specs=in_specs,
            out_specs=pl.BlockSpec((tm, tn), lambda i, j, s: (i, j)),
            scratch_shapes=scratch,
        ),
        compiler_params=pltpu.CompilerParams(
            # rows shard across v7x's 2 TensorCores (each core fits its own weight
            # blocks in its 64 MiB VMEM); cols are "arbitrary" because they reuse
            # the normed scratch written at j == 0.
            dimension_semantics=("parallel", "arbitrary"),
            vmem_limit_bytes=vmem_limit),
    )(*operands)

    return out[:nrows].reshape(B, S, D)


def _reference(x, w, b_lin, ln_params, *, eps):
    """Pure-JAX reference (dropout disabled), mirroring the kernel's dtypes."""
    xf = x.astype(jnp.float32)
    d = xf.shape[-1]
    mean = jnp.mean(xf, axis=-1, keepdims=True)
    xc = xf - mean
    var = jnp.sum(xc * xc, axis=-1, keepdims=True) / max(d - 1, 1)
    std = jnp.sqrt(var)
    normed = ln_params[0] * xc / (std + eps) + ln_params[1]
    y = jnp.dot(normed.astype(w.dtype).reshape(-1, d), w,
                preferred_element_type=jnp.float32).reshape(xf.shape)
    y = y + b_lin.astype(jnp.float32)
    return (xf + y).astype(x.dtype)


if __name__ == "__main__":
    eps = 1e-6
    key = jax.random.PRNGKey(0)
    kx, kw, kx2, kw2 = jax.random.split(key, 4)

    # --- config 1: small demo shape (whole-weight path) ---
    B, S, D = 2, 8, 32
    x = jax.random.normal(kx, (B, S, D), dtype=jnp.float32).astype(jnp.bfloat16)
    w = (jax.random.normal(kw, (D, D), dtype=jnp.float32)
         * (1.0 / jnp.sqrt(D))).astype(jnp.bfloat16)
    b_lin = jnp.zeros((1, D), dtype=jnp.float32)
    ln_params = jnp.array([1.0, 0.0], dtype=jnp.float32)   # [alpha, bias]
    seed = jnp.array([1234], dtype=jnp.int32)

    out_nodrop = residual_connection(x, w, b_lin, ln_params, seed, p=0.0, eps=eps)
    ref = _reference(x, w, b_lin, ln_params, eps=eps)
    assert jnp.allclose(out_nodrop.astype(jnp.float32), ref.astype(jnp.float32),
                        rtol=0.1, atol=0.1), "mismatch (whole-weight path)"

    # --- config 2: exercise the column-tiled weight path (D=256, tn=128) ---
    D2 = 256
    xb = jax.random.normal(kx2, (B, S, D2), dtype=jnp.float32).astype(jnp.bfloat16)
    wb = (jax.random.normal(kw2, (D2, D2), dtype=jnp.float32)
          * (1.0 / jnp.sqrt(D2))).astype(jnp.bfloat16)
    bb = jnp.zeros((1, D2), dtype=jnp.float32)
    out_col = residual_connection(xb, wb, bb, ln_params, seed, p=0.0, eps=eps,
                                  tm=16, tn=128)
    ref_col = _reference(xb, wb, bb, ln_params, eps=eps)
    assert jnp.allclose(out_col.astype(jnp.float32), ref_col.astype(jnp.float32),
                        rtol=0.1, atol=0.1), "mismatch (column-tiled path)"

    # --- dropout run (training semantics; custom counter hash, not torch's RNG) ---
    out = residual_connection(x, w, b_lin, ln_params, seed, p=0.1, eps=eps)
    jax.block_until_ready(out)
    assert out.shape == (B, S, D) and out.dtype == x.dtype
    print("KERNEL_OK")
</pallas_src>

<mosaic_0001>
module attributes {stable_mosaic.version = 11 : i64} {
  func.func @_residual_kernel(%arg0: i32, %arg1: i32, %arg2: memref<1xi32, #tpu.memory_space<smem>>, %arg3: memref<16x32xbf16, #tpu.memory_space<vmem>>, %arg4: memref<32x32xbf16, #tpu.memory_space<vmem>>, %arg5: memref<1x32xf32, #tpu.memory_space<vmem>>, %arg6: memref<2xf32, #tpu.memory_space<smem>>, %arg7: memref<16x32xbf16, #tpu.memory_space<vmem>>) attributes {dimension_semantics = [#tpu.dimension_semantics<parallel>, #tpu.dimension_semantics<arbitrary>], iteration_bounds = array<i64: 1, 1>, scalar_prefetch = 1 : i64, scratch_operands = 0 : i64, tpu.core_type = #tpu.core_type<tc>, window_params = [{transform_indices = @transform_0, window_bounds = array<i64: 16, 32>}, {pipeline_mode = #tpu.pipeline_mode<synchronous>, transform_indices = @transform_1, window_bounds = array<i64: 32, 32>}, {pipeline_mode = #tpu.pipeline_mode<synchronous>, transform_indices = @transform_2, window_bounds = array<i64: 1, 32>}, {transform_indices = @transform_3, window_bounds = array<i64: 2>}, {transform_indices = @transform_4, window_bounds = array<i64: 16, 32>}]} {
    %c0 = arith.constant 0 : index
    %c0_0 = arith.constant 0 : index
    %0 = vector.load %arg3[%c0, %c0_0] : memref<16x32xbf16, #tpu.memory_space<vmem>>, vector<16x32xbf16>
    %1 = arith.extf %0 : vector<16x32xbf16> to vector<16x32xf32>
    %cst = arith.constant dense<0.000000e+00> : vector<16xf32>
    %2 = vector.multi_reduction <add>, %1, %cst [1] : vector<16x32xf32> to vector<16xf32>
    %3 = vector.shape_cast %2 : vector<16xf32> to vector<16x1xf32>
    %4 = arith.mulf %1, %1 : vector<16x32xf32>
    %cst_1 = arith.constant dense<0.000000e+00> : vector<16xf32>
    %5 = vector.multi_reduction <add>, %4, %cst_1 [1] : vector<16x32xf32> to vector<16xf32>
    %6 = vector.shape_cast %5 : vector<16xf32> to vector<16x1xf32>
    %cst_2 = arith.constant 3.125000e-02 : f32
    %7 = vector.broadcast %cst_2 : f32 to vector<16x1xf32>
    %8 = arith.mulf %3, %7 : vector<16x1xf32>
    %9 = arith.mulf %3, %8 : vector<16x1xf32>
    %10 = arith.subf %6, %9 : vector<16x1xf32>
    %cst_3 = arith.constant 0.0322580636 : f32
    %11 = vector.broadcast %cst_3 : f32 to vector<16x1xf32>
    %12 = arith.mulf %10, %11 : vector<16x1xf32>
    %13 = math.sqrt %12 : vector<16x1xf32>
    %cst_4 = arith.constant 9.99999997E-7 : f32
    %14 = vector.broadcast %cst_4 : f32 to vector<16x1xf32>
    %15 = arith.addf %13, %14 : vector<16x1xf32>
    %16 = tpu.reciprocal %15 : vector<16x1xf32> -> vector<16x1xf32>
    %c0_5 = arith.constant 0 : index
    %17 = memref.load %arg6[%c0_5] : memref<2xf32, #tpu.memory_space<smem>>
    %cst_6 = arith.constant 1.000000e+00 : f32
    %18 = arith.mulf %17, %cst_6 : f32
    %19 = vector.broadcast %18 : f32 to vector<16x1xf32>
    %20 = arith.mulf %19, %16 : vector<16x1xf32>
    %c1 = arith.constant 1 : index
    %21 = memref.load %arg6[%c1] : memref<2xf32, #tpu.memory_space<smem>>
    %cst_7 = arith.constant 1.000000e+00 : f32
    %22 = arith.mulf %21, %cst_7 : f32
    %23 = arith.mulf %20, %8 : vector<16x1xf32>
    %24 = vector.broadcast %22 : f32 to vector<16x1xf32>
    %25 = arith.subf %24, %23 : vector<16x1xf32>
    %26 = vector.broadcast %20 : vector<16x1xf32> to vector<16x32xf32>
    %27 = arith.mulf %1, %26 : vector<16x32xf32>
    %28 = vector.broadcast %25 : vector<16x1xf32> to vector<16x32xf32>
    %29 = arith.addf %27, %28 : vector<16x32xf32>
    %30 = arith.truncf %29 : vector<16x32xf32> to vector<16x32xbf16>
    %c0_8 = arith.constant 0 : index
    %c0_9 = arith.constant 0 : index
    %31 = vector.load %arg3[%c0_8, %c0_9] : memref<16x32xbf16, #tpu.memory_space<vmem>>, vector<16x32xbf16>
    %c0_10 = arith.constant 0 : index
    %c0_11 = arith.constant 0 : index
    %32 = vector.load %arg4[%c0_10, %c0_11] : memref<32x32xbf16, #tpu.memory_space<vmem>>, vector<32x32xbf16>
    %cst_12 = arith.constant dense<0.000000e+00> : vector<16x32xf32>
    %33 = tpu.matmul %30, %32, %cst_12 {dimension_numbers = #tpu.dot_dimension_numbers<[1], [0], [0], [1], [0, 0, 1, 1], [], []>} : vector<16x32xbf16>, vector<32x32xbf16>, vector<16x32xf32> -> vector<16x32xf32>
    %c0_13 = arith.constant 0 : index
    %c0_14 = arith.constant 0 : index
    %34 = vector.load %arg5[%c0_13, %c0_14] : memref<1x32xf32, #tpu.memory_space<vmem>>, vector<1x32xf32>
    %35 = vector.broadcast %34 : vector<1x32xf32> to vector<16x32xf32>
    %36 = arith.addf %33, %35 : vector<16x32xf32>
    %37 = arith.extf %31 : vector<16x32xbf16> to vector<16x32xf32>
    %38 = arith.addf %37, %36 : vector<16x32xf32>
    %39 = arith.truncf %38 : vector<16x32xf32> to vector<16x32xbf16>
    %c0_15 = arith.constant 0 : index
    %c0_16 = arith.constant 0 : index
    %40 = vector.load %arg7[%c0_15, %c0_16] : memref<16x32xbf16, #tpu.memory_space<vmem>>, vector<16x32xbf16>
    tpu.vector_store %arg7[%c0_15, %c0_16], %39 {strides = array<i32>} : memref<16x32xbf16, #tpu.memory_space<vmem>>, vector<16x32xbf16>,
    return
  }
  func.func @transform_0(%arg0: i32, %arg1: i32, %arg2: memref<1xi32, #tpu.memory_space<smem>>) -> (i32, i32) {
    %c0_i32 = arith.constant 0 : i32
    %c0_i32_0 = arith.constant 0 : i32
    return %arg0, %c0_i32 : i32, i32
  }
  func.func @transform_1(%arg0: i32, %arg1: i32, %arg2: memref<1xi32, #tpu.memory_space<smem>>) -> (i32, i32) {
    %c0_i32 = arith.constant 0 : i32
    %c0_i32_0 = arith.constant 0 : i32
    %c0_i32_1 = arith.constant 0 : i32
    return %c0_i32, %c0_i32_0 : i32, i32
  }
  func.func @transform_2(%arg0: i32, %arg1: i32, %arg2: memref<1xi32, #tpu.memory_space<smem>>) -> (i32, i32) {
    %c0_i32 = arith.constant 0 : i32
    %c0_i32_0 = arith.constant 0 : i32
    %c0_i32_1 = arith.constant 0 : i32
    return %c0_i32, %c0_i32_0 : i32, i32
  }
  func.func @transform_3(%arg0: i32, %arg1: i32, %arg2: memref<1xi32, #tpu.memory_space<smem>>) -> i32 {
    %c0_i32 = arith.constant 0 : i32
    %c0_i32_0 = arith.constant 0 : i32
    return %c0_i32 : i32
  }
  func.func @transform_4(%arg0: i32, %arg1: i32, %arg2: memref<1xi32, #tpu.memory_space<smem>>) -> (i32, i32) {
    %c0_i32 = arith.constant 0 : i32
    return %arg0, %arg1 : i32, i32
  }
}

</mosaic_0001>

<llo_original>
// kernel: tpu_custom_call.1
$region0: #{tpu_custom_call.1}
  #allocation0 [shape = 'u32[]', space=smem, size = 0x4, offset = 0x4, fixed_abs, tag = 'smem constant byte address 0x4 - core index']
  #allocation1 [shape = 'u32[144,128]{1,0:T(1,128)}', space=vmem, size = 0x12000, scoped, tag = 'internal scratch']
  #allocation2 [shape = 's32[1]{0}', space=sflag, size = 0x4, scoped, tag = 'scoped memory for tpu_custom_call.1']
  #allocation3 [shape = 's32[1]{0:T(128)S(6)}', space=smem, size = 0x200, scoped, tag = 'prefetched SMEM operand 0']
  %s0 = inlined_call_operand.<no memory space> [shape: s32[1], index: 0, kind: input, shape index: {}]
  %s1 = inlined_call_operand.hbm [shape: bf16[16,32], index: 1, kind: input, shape index: {}]
  %s2 = inlined_call_operand.hbm [shape: bf16[32,32], index: 2, kind: input, shape index: {}]
  %s3 = inlined_call_operand.vmem [shape: f32[1,32], index: 3, kind: input, shape index: {}]
  %s4 = inlined_call_operand.vmem [shape: f32[2], index: 4, kind: input, shape index: {}]
  %s5 = inlined_call_operand.hbm [shape: bf16[16,32], index: 5, kind: output, shape index: {}]
  %s6 = sld [smem:[#allocation0]]
  $region38: #{tpu_custom_call.1} parent=0
    _
  %s8 = ssub.s32 1, %s6
  %s9 = scalar_select 0, %s8, %s6
  %10 = sst [smem:[#allocation3]] %s0
  $region1: #{tpu_custom_call.1} parent=0
    #allocation4 [shape = 'u8[4096]{0}', space=vmem, size = 0x1000, scoped, tag = 'input window, operand 1, single buffered']
    #allocation5 [shape = 's32[1]{0}', space=sflag, size = 0x4, scoped, tag = 'scoped memory for tpu_custom_call.1']
    #allocation6 [shape = 's32[1]{0}', space=sflag, size = 0x4, scoped, tag = 'scoped memory for tpu_custom_call.1']
    #allocation7 [shape = 's32[1]{0}', space=sflag, size = 0x4, scoped, tag = 'scoped memory for tpu_custom_call.1']
    #allocation8 [shape = 'u8[8192]{0}', space=vmem, size = 0x2000, scoped, tag = 'input window, operand 2, single buffered']
    #allocation9 [shape = 's32[1]{0}', space=sflag, size = 0x4, scoped, tag = 'scoped memory for tpu_custom_call.1']
    #allocation10 [shape = 'u8[512]{0}', space=smem, size = 0x200, scoped, tag = 'input window, operand 4, single buffered']
    #allocation11 [shape = 'u8[4096]{0}', space=vmem, size = 0x1000, scoped, tag = 'output window, operand 0, single buffered']
    %11 = vsyncpa [#allocation5], 0
    %12 = vsyncpa [#allocation9], 0
    %13 = vsyncpa [#allocation7], 0
    %14 = vsyncpa [#allocation6], 0
    // Predicated region
    $region2: #{tpu_custom_call.1} parent=1 // pred_check
      _
    $region3: #{tpu_custom_call.1} parent=1 // pred_check_branch
      %16 = sbr.rel (0) target = $region5
    $region4: #{tpu_custom_call.1} parent=1 // pred_region
      %s18 = ssub.s32 128, 128
      %19 = vsyncadd [#allocation5], %s18
      %s20 = sshll.u32 [#allocation4], 4
      %s21 = int_to_ptr.vmem [resolvable:$true] %s20
      %26 = dma.hbm_to_vmem [thread:$0]  %s1, 128, %s21, [#allocation5], 64, 64, 4
    $region5: #{tpu_custom_call.1} parent=1 // pred_fallthru
      _
    // Predicated region
    $region6: #{tpu_custom_call.1} parent=1 // pred_check
      _
    $region7: #{tpu_custom_call.1} parent=1 // pred_check_branch
      %28 = sbr.rel (0) target = $region9
    $region8: #{tpu_custom_call.1} parent=1 // pred_region
      %s30 = ssub.s32 256, 256
      %31 = vsyncadd [#allocation9], %s30
      %s32 = sshll.u32 [#allocation8], 4
      %s33 = int_to_ptr.vmem [resolvable:$true] %s32
      %38 = dma.hbm_to_vmem [thread:$0]  %s2, 256, %s33, [#allocation9], 64, 64, 4
    $region9: #{tpu_custom_call.1} parent=1 // pred_fallthru
      _
    // Predicated region
    $region10: #{tpu_custom_call.1} parent=1 // pred_check
      _
    $region11: #{tpu_custom_call.1} parent=1 // pred_check_branch
      %40 = sbr.rel (0) target = $region13
    $region12: #{tpu_custom_call.1} parent=1 // pred_region
      _
    $region13: #{tpu_custom_call.1} parent=1 // pred_fallthru
      _
    // Predicated region
    $region14: #{tpu_custom_call.1} parent=1 // pred_check
      _
    $region15: #{tpu_custom_call.1} parent=1 // pred_check_branch
      %42 = sbr.rel (0) target = $region17
    $region16: #{tpu_custom_call.1} parent=1 // pred_region
      %s44 = ssub.s32 16, 16
      %45 = vsyncadd [#allocation7], %s44
      %s47 = sshll.u32 %s4, 4
      %s48 = int_to_ptr.vmem [resolvable:$true] %s47
      %50 = dma.vmem_to_smem %s48, 16, [#allocation10], [#allocation7]
    $region17: #{tpu_custom_call.1} parent=1 // pred_fallthru
      _
    // Predicated region
    $region18: #{tpu_custom_call.1} parent=1 // pred_check
      _
    $region19: #{tpu_custom_call.1} parent=1 // pred_check_branch
      %52 = sbr.rel (0) target = $region21
    $region20: #{tpu_custom_call.1} parent=1 // pred_region
      %53 = dma.done [#allocation5], 128
    $region21: #{tpu_custom_call.1} parent=1 // pred_fallthru
      _
    // Predicated region
    $region22: #{tpu_custom_call.1} parent=1 // pred_check
      _
    $region23: #{tpu_custom_call.1} parent=1 // pred_check_branch
      %55 = sbr.rel (0) target = $region25
    $region24: #{tpu_custom_call.1} parent=1 // pred_region
      %56 = dma.done [#allocation9], 256
    $region25: #{tpu_custom_call.1} parent=1 // pred_fallthru
      _
    // Predicated region
    $region26: #{tpu_custom_call.1} parent=1 // pred_check
      _
    $region27: #{tpu_custom_call.1} parent=1 // pred_check_branch
      %58 = sbr.rel (0) target = $region29
    $region28: #{tpu_custom_call.1} parent=1 // pred_region
      %59 = dma.done [#allocation7], 16
    $region29: #{tpu_custom_call.1} parent=1 // pred_fallthru
      _
    %60 = sfence
    %v62 = vld [vmem:[#allocation4] sm:$0xf]
    %v63 = vld [vmem:[#allocation4 + $0x4] sm:$0xf]
    %v64 = vunpack.c.l.bf16 %v62
    %v65 = vunpack.c.l.bf16 %v63
    %vm66 = vcmask 261120
    %v67 = vsel %vm66, %v64, 0.0
    %68 = vadd.xlane.f32.xlu0 %v67
    %v69 = vpop.xlane.xlu0 %68
    %v70 = vsel %vm66, %v65, 0.0
    %71 = vadd.xlane.f32.xlu0 %v70
    %v72 = vpop.xlane.xlu0 %71
    %v73 = vmul.f32 %v64, %v64
    %v74 = vmul.f32 %v65, %v65
    %v75 = vsel %vm66, %v73, 0.0
    %76 = vadd.xlane.f32.xlu0 %v75
    %v77 = vpop.xlane.xlu0 %76
    %v78 = vsel %vm66, %v74, 0.0
    %79 = vadd.xlane.f32.xlu0 %v78
    %v80 = vpop.xlane.xlu0 %79
    %v81 = vmul.f32 %v69, 0.03125
    %v82 = vmul.f32 %v72, 0.03125
    %v83 = vmul.f32 %v69, %v81
    %v84 = vmul.f32 %v72, %v82
    %v85 = vsub.f32 %v77, %v83
    %v86 = vsub.f32 %v80, %v84
    %v87 = vmul.f32 %v85, 0.032258064
    %v88 = vmul.f32 %v86, 0.032258064
    %v89 = vrsqrt.pop %v87
    %v90 = vmul.f32 %v87, %v89
    %vm91 = vcmp.eq.f32.partialorder %v87, inf
    %v92 = vsel %vm91, %v87, %v90
    %vm93 = vcmp.eq.f32.partialorder %v87, 0.0
    %v94 = vand.u32 %v87, 2147483648
    %v95 = vsel %vm93, %v94, %v92
    %v96 = vrsqrt.pop %v88
    %v97 = vmul.f32 %v88, %v96
    %vm98 = vcmp.eq.f32.partialorder %v88, inf
    %v99 = vsel %vm98, %v88, %v97
    %vm100 = vcmp.eq.f32.partialorder %v88, 0.0
    %v101 = vand.u32 %v88, 2147483648
    %v102 = vsel %vm100, %v101, %v99
    %v103 = vadd.f32 %v95, 1e-06
    %v104 = vadd.f32 %v102, 1e-06
    %v105 = vrcp.pop %v103
    %v106 = vrcp.pop %v104
    %s107 = sld [smem:[#allocation10]]
    %v108 = vstv %s107
    %v109 = vmul.f32 %v108, %v105
    %v110 = vmul.f32 %v108, %v106
    %s111 = sld [smem:[#allocation10 + $0x1]]
    %v112 = vmul.f32 %v109, %v81
    %v113 = vmul.f32 %v110, %v82
    %v114 = vstv %s111
    %v115 = vsub.f32 %v114, %v112
    %v116 = vsub.f32 %v114, %v113
    %v117 = vmul.f32 %v64, %v109
    %v118 = vmul.f32 %v65, %v110
    %v119 = vadd.f32 %v117, %v115
    %v120 = vadd.f32 %v118, %v116
    %v121 = vpack.c.bf16 %v120, %v119
    %v122 = vld [vmem:[#allocation8] sm:$0xf]
    %v123 = vld [vmem:[#allocation8 + $0x4] sm:$0xf]
    %v124 = vld [vmem:[#allocation8 + $0x8] sm:$0xf]
    %v125 = vld [vmem:[#allocation8 + $0xc] sm:$0xf]
    %v126 = vld [vmem:[%s3] sm:$0x1]
    %v128 = vlaneseq
    %v129 = vshrl.u32 %v128, 7
    %v130 = vsub.s32 0, %v129
    %v131 = vrot.slane %v126, %v130
    %v137 = vunpack.c.l.b16 %v122
    %v138 = vunpack.c.l.b16 %v123
    %v139 = vunpack.c.l.b16 %v124
    %v140 = vunpack.c.l.b16 %v125
    %v141 = vpack.c.b16 %v138, %v137
    %v142 = vpack.c.b16 %v140, %v139
    %v146 = vsel %vm66, %v121, 0
    %148 = vmatprep.subr.bf16.mxu0 0
    %149 = vmatpush1.bf16.msra.mxu0 %v141
    %150 = vmatprep.subr.bf16.mxu0 0
    %151 = vmatpush1.bf16.msra.mxu0 %v142
    %152 = vmatprep.subr.bf16.mxu0 0
    %153 = vmatpush1.bf16.msra.mxu0 0
    %154 = vmatprep.subr.bf16.mxu0 0
    %155 = vmatpush1.bf16.msra.mxu0 0
    %156 = vmatprep.subr.bf16.mxu0 0
    %157 = vmatpush1.bf16.msra.mxu0 0
    %158 = vmatprep.subr.bf16.mxu0 0
    %159 = vmatpush1.bf16.msra.mxu0 0
    %160 = vmatprep.subr.bf16.mxu0 0
    %161 = vmatpush1.bf16.msra.mxu0 0
    %162 = vmatprep.subr.bf16.mxu0 0
    %163 = vmatpush1.bf16.msra.mxu0 0
    %164 = vmatprep.subr.bf16.mxu0 0
    %165 = vmatpush1.bf16.msra.mxu0 0
    %166 = vmatprep.subr.bf16.mxu0 0
    %167 = vmatpush1.bf16.msra.mxu0 0
    %168 = vmatprep.subr.bf16.mxu0 0
    %169 = vmatpush1.bf16.msra.mxu0 0
    %170 = vmatprep.subr.bf16.mxu0 0
    %171 = vmatpush1.bf16.msra.mxu0 0
    %172 = vmatprep.subr.bf16.mxu0 0
    %173 = vmatpush1.bf16.msra.mxu0 0
    %174 = vmatprep.subr.bf16.mxu0 0
    %175 = vmatpush1.bf16.msra.mxu0 0
    %176 = vmatprep.subr.bf16.mxu0 0
    %177 = vmatpush1.bf16.msra.mxu0 0
    %178 = vmatprep.subr.bf16.mxu0 0
    %179 = vmatpush1.bf16.msra.mxu0 0
    %180 = vmatprep.mubr.bf16.mxu0 0
    %181 = vmatmul.mubr.bf16.gmra.mrb[0].mxu0 %v146
    %v182 = vpop.f32.mrb[0].mxu0
    %v183 = vadd.f32 %v131, %v182
    %v184 = vpop.f32.mrb[0].mxu0
    %v185 = vpop.f32.mrb[0].mxu0
    %v186 = vadd.f32 %v131, %v185
    %v187 = vpop.f32.mrb[0].mxu0
    %188 = vdwg.mxu0
    %v189 = vadd.f32 %v64, %v183
    %v190 = vadd.f32 %v65, %v186
    %v191 = vpack.c.bf16 %v190, %v189
    %v193 = vunpack.c.l.b16 %v191
    %v194 = vunpack.c.h.b16 %v191
    %v195 = vpack.c.b16 %v193, %v193
    %v196 = vpack.c.b16 %v194, %v194
    %vm199 = vcmask 257024
    %200 = vst.msk [vmem:[#allocation11] sm:$0xf] %vm199, %v195
    %201 = vst.msk [vmem:[#allocation11 + $0x4] sm:$0xf] %vm199, %v196
    // Predicated region
    $region30: #{tpu_custom_call.1} parent=1 // pred_check
      _
    $region31: #{tpu_custom_call.1} parent=1 // pred_check_branch
      %203 = sbr.rel (0) target = $region33
    $region32: #{tpu_custom_call.1} parent=1 // pred_region
      %s205 = ssub.s32 128, 128
      %206 = vsyncadd [#allocation6], %s205
      %s207 = sshll.u32 [#allocation11], 4
      %s208 = int_to_ptr.vmem [resolvable:$true] %s207
      %213 = dma.vmem_to_hbm [thread:$0]  %s208, 128, %s5, [#allocation6], 64, 64, 4
    $region33: #{tpu_custom_call.1} parent=1 // pred_fallthru
      _
    // Predicated region
    $region34: #{tpu_custom_call.1} parent=1 // pred_check
      _
    $region35: #{tpu_custom_call.1} parent=1 // pred_check_branch
      %215 = sbr.rel (0) target = $region37
    $region36: #{tpu_custom_call.1} parent=1 // pred_region
      %216 = dma.done [#allocation6], 128
    $region37: #{tpu_custom_call.1} parent=1 // pred_fallthru
      _
    %217 = vsyncpa [#allocation5], 1
    %218 = vsyncpa [#allocation9], 1
    %219 = vsyncpa [#allocation6], 1
    %220 = vsyncpa [#allocation7], 1

</llo_original>
